<compile_context>
chip_gen: v7x
topology: tpu7x:2x2x1
jax: 0.10.0
libtpu: 0.0.40
codegen_flags: <defaults>
</compile_context>

<pallas_src>
import functools

import jax
import jax.numpy as jnp
import numpy as np
from jax.experimental import pallas as pl
from jax.experimental.pallas import tpu as pltpu

NUM_CLASSES = 2
_MIB = 1024 * 1024


def _round_up(a, b):
    return ((a + b - 1) // b) * b


# ---------------------------------------------------------------------------
# Kernel: one grid step processes (tbr) rows of G-grouped batch elements.
#   x_ref : (tbr, G*M*NC)   lane-dense input rows (G batch elems per row)
#   w*_ref: block-diagonal weight slabs (VMEM-resident across the grid)
#   out   : (tbr, G*NC)
# ---------------------------------------------------------------------------
def stacking_kernel(x_ref, w1_ref, b1_ref, w2_ref, b2_ref, w3_ref, b3_ref,
                    out_ref):
    x = x_ref[...].astype(w1_ref.dtype)          # no-op on the default f32 path
    # conv1 (im2col, block-diagonal) + bias + ReLU          -> (tbr, G*NC*C)
    h1 = jnp.dot(x, w1_ref[...], preferred_element_type=jnp.float32)
    h1 = jnp.maximum(h1 + b1_ref[...], 0.0)
    # TODO(synk): Dropout(0.3) is inference-mode identity; train-mode masking
    # is not implemented.
    # conv2 (block-diagonal) + bias + ReLU                  -> (tbr, G*2C)
    h2 = jnp.dot(h1.astype(w2_ref.dtype), w2_ref[...],
                 preferred_element_type=jnp.float32)
    h2 = jnp.maximum(h2 + b2_ref[...], 0.0)
    # linear (block-diagonal) + bias                        -> (tbr, G*NC)
    out = jnp.dot(h2.astype(w3_ref.dtype), w3_ref[...],
                  preferred_element_type=jnp.float32) + b3_ref[...]
    out_ref[...] = out.astype(out_ref.dtype)


def pack_params(params, compute_dtype=jnp.float32):
    """One-time static repacking of PyTorch-shaped weights into block-diagonal
    slabs so the kernel can consume x with only a free row-major reshape."""
    w1 = jnp.asarray(params["conv1_w"])[:, 0, :, 0]      # (C, M)
    b1 = jnp.asarray(params["conv1_b"])                  # (C,)
    w2 = jnp.asarray(params["conv2_w"])[:, :, 0, :]      # (2C, C, NC)
    b2 = jnp.asarray(params["conv2_b"])                  # (2C,)
    w3 = jnp.asarray(params["lin_w"])                    # (NC, 2C)
    b3 = jnp.asarray(params["lin_b"])                    # (NC,)
    C, M = w1.shape
    C2, _, NC = w2.shape

    # Group size: G consecutive batch elements share one ~128-lane row.
    G = max(1, -(-128 // (M * NC)))                      # = 8 for M=8, NC=2

    # A1[m*NC+v, w*C+c] = w1[c, m] * delta(v, w)   (im2col form of conv1)
    eye = jnp.eye(NC, dtype=w1.dtype)
    a1 = (w1[None, :, :, None] * eye[:, None, None, :]
          ).reshape(NC * C, M * NC).T                    # (M*NC, NC*C)
    # A2[w*C+c, d] = w2[d, c, w]
    a2 = jnp.transpose(w2, (0, 2, 1)).reshape(C2, NC * C).T   # (NC*C, 2C)
    # A3[d, n] = w3[n, d]
    a3 = w3.T                                            # (2C, NC)

    ident = jnp.eye(G, dtype=w1.dtype)
    b1v = jnp.tile(b1, NC)                               # [w*C+c] -> b1[c]

    return {
        "w1": jnp.kron(ident, a1).astype(compute_dtype),          # (G*M*NC, G*NC*C)
        "b1": jnp.tile(b1v, G).reshape(1, G * NC * C).astype(jnp.float32),
        "w2": jnp.kron(ident, a2).astype(compute_dtype),          # (G*NC*C, G*2C)
        "b2": jnp.tile(b2, G).reshape(1, G * C2).astype(jnp.float32),
        "w3": jnp.kron(ident, a3).astype(compute_dtype),          # (G*2C, G*NC)
        "b3": jnp.tile(b3, G).reshape(1, G * NC).astype(jnp.float32),
    }


@functools.partial(jax.jit, static_argnames=("block_b",))
def model_stacking_forward(x, packed, *, block_b=262144):
    """x: (B, 1, M, NC) float32; packed: output of pack_params(). -> (B, NC) f32."""
    B, _, M, NC = x.shape
    feat = M * NC
    gk, n1 = packed["w1"].shape
    G = gk // feat
    n2 = packed["w2"].shape[1]
    n3 = packed["w3"].shape[1]

    # ---- Layout: (B,1,M,NC) -> (R, G*feat). Free reshapes when B % G == 0;
    # ragged batches pay a single small pad pass (copies x once).
    x2 = x.reshape(B, feat)
    Bp = _round_up(B, G)
    if Bp != B:
        x2 = jnp.pad(x2, ((0, Bp - B), (0, 0)))
    R = Bp // G
    xg = x2.reshape(R, G * feat)

    # ---- Batch-row tile from a VMEM budget (double-buffered streamed tiles).
    in_bytes = G * feat * xg.dtype.itemsize              # dense input row
    out_bytes = _round_up(n3, 128) * 4                   # out row, lane-padded in VMEM
    per_row = 2 * (in_bytes + out_bytes)                 # x2 buffers each
    try:   # generation-aware: v7x has 64 MiB/TC, v5e/v6e have 128 MiB physical
        vmem_phys = int(pltpu.get_tpu_info().vmem_capacity_bytes)
    except Exception:
        vmem_phys = 64 * _MIB
    budget = min(max(vmem_phys // 3, 16 * _MIB), 40 * _MIB)

    tbr = max(64, (budget // per_row) // 64 * 64)            # multiple of 64 rows
    tbr = min(tbr, max(64, (block_b // G) // 64 * 64))       # user cap (elements)
    if R >= 4 * 64:                                          # >= 4 steps on big B
        tbr = min(tbr, max(64, _round_up(pl.cdiv(R, 4), 64)))
    tbr = min(tbr, _round_up(R, 64))
    if R <= tbr:                                             # single partial tile
        tbr = _round_up(R, 8)
    nb = pl.cdiv(R, tbr)

    out_g = pl.pallas_call(
        stacking_kernel,
        out_shape=jax.ShapeDtypeStruct((R, n3), jnp.float32),
        grid=(nb,),
        in_specs=[
            pl.BlockSpec((tbr, G * feat), lambda i: (i, 0)),   # x rows (streamed)
            pl.BlockSpec((gk, n1), lambda i: (0, 0)),          # W1 blk (resident)
            pl.BlockSpec((1, n1), lambda i: (0, 0)),           # b1
            pl.BlockSpec((n1, n2), lambda i: (0, 0)),          # W2 blk
            pl.BlockSpec((1, n2), lambda i: (0, 0)),           # b2
            pl.BlockSpec((n2, n3), lambda i: (0, 0)),          # W3 blk
            pl.BlockSpec((1, n3), lambda i: (0, 0)),           # b3
        ],
        out_specs=pl.BlockSpec((tbr, n3), lambda i: (i, 0)),
        compiler_params=pltpu.CompilerParams(
            dimension_semantics=("parallel",),
            vmem_limit_bytes=int(budget + 8 * _MIB)),
    )(xg, packed["w1"], packed["b1"], packed["w2"], packed["b2"],
      packed["w3"], packed["b3"])

    out = out_g.reshape(Bp, NC)                              # free, row-major
    if Bp != B:
        out = out[:B]
    return out


def reference_forward(x, params):
    """Pure-JAX f32 reference mirroring the PyTorch module (eval mode)."""
    w1 = params["conv1_w"][:, 0, :, 0]
    b1 = params["conv1_b"]
    w2 = params["conv2_w"][:, :, 0, :]
    b2 = params["conv2_b"]
    w3 = params["lin_w"]
    b3 = params["lin_b"]
    h1 = jnp.einsum("bmw,cm->bcw", x[:, 0], w1) + b1[None, :, None]
    h1 = jnp.maximum(h1, 0.0)
    h2 = jnp.einsum("bcw,dcw->bd", h1, w2) + b2[None, :]
    h2 = jnp.maximum(h2, 0.0)
    return h2 @ w3.T + b3[None, :]


if __name__ == "__main__":
    # Shapes implied by the module: num_models=8, num_channels=4, NUM_CLASSES=2.
    B, M, C, NC = 2, 8, 4, NUM_CLASSES

    key = jax.random.PRNGKey(0)
    kx, k1, k2, k3, k4, k5, k6 = jax.random.split(key, 7)

    x = jax.random.normal(kx, (B, 1, M, NC), dtype=jnp.float32)
    params = {
        "conv1_w": 0.1 * jax.random.normal(k1, (C, 1, M, 1), dtype=jnp.float32),
        "conv1_b": 0.1 * jax.random.normal(k2, (C,), dtype=jnp.float32),
        "conv2_w": 0.1 * jax.random.normal(k3, (2 * C, C, 1, NC), dtype=jnp.float32),
        "conv2_b": 0.1 * jax.random.normal(k4, (2 * C,), dtype=jnp.float32),
        "lin_w": 0.1 * jax.random.normal(k5, (NC, 2 * C), dtype=jnp.float32),
        "lin_b": 0.1 * jax.random.normal(k6, (NC,), dtype=jnp.float32),
    }

    packed = pack_params(params)   # static one-time repack; f32 slabs

    # Tolerance note: all storage/accumulation is f32; the slack only covers the
    # backends' default f32-matmul pass configuration on the MXU.
    tol = dict(rtol=1e-2, atol=5e-3)

    # 1) Tiny batch (single partial tile).
    out = jax.block_until_ready(model_stacking_forward(x, packed))
    ref = reference_forward(x, params)
    np.testing.assert_allclose(np.asarray(out), np.asarray(ref), **tol)

    # 2) Ragged batch (B % 8 != 0): row padding + masked partial tail block.
    xb = jax.random.normal(jax.random.PRNGKey(1), (300, 1, M, NC), dtype=jnp.float32)
    outb = jax.block_until_ready(model_stacking_forward(xb, packed))
    refb = reference_forward(xb, params)
    np.testing.assert_allclose(np.asarray(outb), np.asarray(refb), **tol)

    # 3) Larger batch with a small forced tile: multi-step "parallel" grid.
    xc = jax.random.normal(jax.random.PRNGKey(2), (4096, 1, M, NC), dtype=jnp.float32)
    outc = jax.block_until_ready(model_stacking_forward(xc, packed, block_b=512))
    refc = reference_forward(xc, params)
    np.testing.assert_allclose(np.asarray(outc), np.asarray(refc), **tol)

    print("KERNEL_OK")
</pallas_src>

<mosaic_0001>
module attributes {stable_mosaic.version = 11 : i64} {
  func.func @stacking_kernel(%arg0: i32, %arg1: memref<8x128xf32, #tpu.memory_space<vmem>>, %arg2: memref<128x64xf32, #tpu.memory_space<vmem>>, %arg3: memref<1x64xf32, #tpu.memory_space<vmem>>, %arg4: memref<64x64xf32, #tpu.memory_space<vmem>>, %arg5: memref<1x64xf32, #tpu.memory_space<vmem>>, %arg6: memref<64x16xf32, #tpu.memory_space<vmem>>, %arg7: memref<1x16xf32, #tpu.memory_space<vmem>>, %arg8: memref<8x16xf32, #tpu.memory_space<vmem>>) attributes {dimension_semantics = [#tpu.dimension_semantics<parallel>], iteration_bounds = array<i64: 1>, scalar_prefetch = 0 : i64, scratch_operands = 0 : i64, tpu.core_type = #tpu.core_type<tc>, window_params = [{transform_indices = @transform_0, window_bounds = array<i64: 8, 128>}, {pipeline_mode = #tpu.pipeline_mode<synchronous>, transform_indices = @transform_1, window_bounds = array<i64: 128, 64>}, {pipeline_mode = #tpu.pipeline_mode<synchronous>, transform_indices = @transform_2, window_bounds = array<i64: 1, 64>}, {pipeline_mode = #tpu.pipeline_mode<synchronous>, transform_indices = @transform_3, window_bounds = array<i64: 64, 64>}, {pipeline_mode = #tpu.pipeline_mode<synchronous>, transform_indices = @transform_4, window_bounds = array<i64: 1, 64>}, {pipeline_mode = #tpu.pipeline_mode<synchronous>, transform_indices = @transform_5, window_bounds = array<i64: 64, 16>}, {pipeline_mode = #tpu.pipeline_mode<synchronous>, transform_indices = @transform_6, window_bounds = array<i64: 1, 16>}, {transform_indices = @transform_7, window_bounds = array<i64: 8, 16>}]} {
    %c0 = arith.constant 0 : index
    %c0_0 = arith.constant 0 : index
    %0 = vector.load %arg1[%c0, %c0_0] : memref<8x128xf32, #tpu.memory_space<vmem>>, vector<8x128xf32>
    %c0_1 = arith.constant 0 : index
    %c0_2 = arith.constant 0 : index
    %1 = vector.load %arg2[%c0_1, %c0_2] : memref<128x64xf32, #tpu.memory_space<vmem>>, vector<128x64xf32>
    %cst = arith.constant dense<0.000000e+00> : vector<8x64xf32>
    %2 = tpu.matmul %0, %1, %cst {dimension_numbers = #tpu.dot_dimension_numbers<[1], [0], [0], [1], [0, 0, 1, 1], [], []>} : vector<8x128xf32>, vector<128x64xf32>, vector<8x64xf32> -> vector<8x64xf32>
    %c0_3 = arith.constant 0 : index
    %c0_4 = arith.constant 0 : index
    %3 = vector.load %arg3[%c0_3, %c0_4] : memref<1x64xf32, #tpu.memory_space<vmem>>, vector<1x64xf32>
    %4 = vector.broadcast %3 : vector<1x64xf32> to vector<8x64xf32>
    %5 = arith.addf %2, %4 : vector<8x64xf32>
    %cst_5 = arith.constant 0.000000e+00 : f32
    %6 = vector.broadcast %cst_5 : f32 to vector<8x64xf32>
    %7 = arith.maximumf %5, %6 : vector<8x64xf32>
    %c0_6 = arith.constant 0 : index
    %c0_7 = arith.constant 0 : index
    %8 = vector.load %arg4[%c0_6, %c0_7] : memref<64x64xf32, #tpu.memory_space<vmem>>, vector<64x64xf32>
    %cst_8 = arith.constant dense<0.000000e+00> : vector<8x64xf32>
    %9 = tpu.matmul %7, %8, %cst_8 {dimension_numbers = #tpu.dot_dimension_numbers<[1], [0], [0], [1], [0, 0, 1, 1], [], []>} : vector<8x64xf32>, vector<64x64xf32>, vector<8x64xf32> -> vector<8x64xf32>
    %c0_9 = arith.constant 0 : index
    %c0_10 = arith.constant 0 : index
    %10 = vector.load %arg5[%c0_9, %c0_10] : memref<1x64xf32, #tpu.memory_space<vmem>>, vector<1x64xf32>
    %11 = vector.broadcast %10 : vector<1x64xf32> to vector<8x64xf32>
    %12 = arith.addf %9, %11 : vector<8x64xf32>
    %cst_11 = arith.constant 0.000000e+00 : f32
    %13 = vector.broadcast %cst_11 : f32 to vector<8x64xf32>
    %14 = arith.maximumf %12, %13 : vector<8x64xf32>
    %c0_12 = arith.constant 0 : index
    %c0_13 = arith.constant 0 : index
    %15 = vector.load %arg6[%c0_12, %c0_13] : memref<64x16xf32, #tpu.memory_space<vmem>>, vector<64x16xf32>
    %cst_14 = arith.constant dense<0.000000e+00> : vector<8x16xf32>
    %16 = tpu.matmul %14, %15, %cst_14 {dimension_numbers = #tpu.dot_dimension_numbers<[1], [0], [0], [1], [0, 0, 1, 1], [], []>} : vector<8x64xf32>, vector<64x16xf32>, vector<8x16xf32> -> vector<8x16xf32>
    %c0_15 = arith.constant 0 : index
    %c0_16 = arith.constant 0 : index
    %17 = vector.load %arg7[%c0_15, %c0_16] : memref<1x16xf32, #tpu.memory_space<vmem>>, vector<1x16xf32>
    %18 = vector.broadcast %17 : vector<1x16xf32> to vector<8x16xf32>
    %19 = arith.addf %16, %18 : vector<8x16xf32>
    %c0_17 = arith.constant 0 : index
    %c0_18 = arith.constant 0 : index
    %20 = vector.load %arg8[%c0_17, %c0_18] : memref<8x16xf32, #tpu.memory_space<vmem>>, vector<8x16xf32>
    tpu.vector_store %arg8[%c0_17, %c0_18], %19 {strides = array<i32>} : memref<8x16xf32, #tpu.memory_space<vmem>>, vector<8x16xf32>,
    return
  }
  func.func @transform_0(%arg0: i32) -> (i32, i32) {
    %c0_i32 = arith.constant 0 : i32
    %c0_i32_0 = arith.constant 0 : i32
    return %arg0, %c0_i32 : i32, i32
  }
  func.func @transform_1(%arg0: i32) -> (i32, i32) {
    %c0_i32 = arith.constant 0 : i32
    %c0_i32_0 = arith.constant 0 : i32
    %c0_i32_1 = arith.constant 0 : i32
    return %c0_i32, %c0_i32_0 : i32, i32
  }
  func.func @transform_2(%arg0: i32) -> (i32, i32) {
    %c0_i32 = arith.constant 0 : i32
    %c0_i32_0 = arith.constant 0 : i32
    %c0_i32_1 = arith.constant 0 : i32
    return %c0_i32, %c0_i32_0 : i32, i32
  }
  func.func @transform_3(%arg0: i32) -> (i32, i32) {
    %c0_i32 = arith.constant 0 : i32
    %c0_i32_0 = arith.constant 0 : i32
    %c0_i32_1 = arith.constant 0 : i32
    return %c0_i32, %c0_i32_0 : i32, i32
  }
  func.func @transform_4(%arg0: i32) -> (i32, i32) {
    %c0_i32 = arith.constant 0 : i32
    %c0_i32_0 = arith.constant 0 : i32
    %c0_i32_1 = arith.constant 0 : i32
    return %c0_i32, %c0_i32_0 : i32, i32
  }
  func.func @transform_5(%arg0: i32) -> (i32, i32) {
    %c0_i32 = arith.constant 0 : i32
    %c0_i32_0 = arith.constant 0 : i32
    %c0_i32_1 = arith.constant 0 : i32
    return %c0_i32, %c0_i32_0 : i32, i32
  }
  func.func @transform_6(%arg0: i32) -> (i32, i32) {
    %c0_i32 = arith.constant 0 : i32
    %c0_i32_0 = arith.constant 0 : i32
    %c0_i32_1 = arith.constant 0 : i32
    return %c0_i32, %c0_i32_0 : i32, i32
  }
  func.func @transform_7(%arg0: i32) -> (i32, i32) {
    %c0_i32 = arith.constant 0 : i32
    %c0_i32_0 = arith.constant 0 : i32
    return %arg0, %c0_i32 : i32, i32
  }
}

</mosaic_0001>

<llo_original>
// kernel: model_stacking_forward.1
$region0: #{model_stacking_forward.1}
  #allocation0 [shape = 'u32[]', space=smem, size = 0x4, offset = 0x4, fixed_abs, tag = 'smem constant byte address 0x4 - core index']
  #allocation1 [shape = 'u32[144,128]{1,0:T(1,128)}', space=vmem, size = 0x12000, scoped, tag = 'internal scratch']
  %s0 = inlined_call_operand.vmem [shape: f32[1,128], index: 0, kind: input, shape index: {}]
  %s1 = inlined_call_operand.vmem [shape: f32[128,64], index: 1, kind: input, shape index: {}]
  %s2 = inlined_call_operand.vmem [shape: f32[1,64], index: 2, kind: input, shape index: {}]
  %s3 = inlined_call_operand.vmem [shape: f32[64,64], index: 3, kind: input, shape index: {}]
  %s4 = inlined_call_operand.vmem [shape: f32[1,64], index: 4, kind: input, shape index: {}]
  %s5 = inlined_call_operand.vmem [shape: f32[64,16], index: 5, kind: input, shape index: {}]
  %s6 = inlined_call_operand.vmem [shape: f32[1,16], index: 6, kind: input, shape index: {}]
  %s7 = inlined_call_operand.vmem [shape: f32[1,16], index: 7, kind: output, shape index: {}]
  %s8 = sld [smem:[#allocation0]]
  $region68: #{model_stacking_forward.1} parent=0
    _
  %s10 = ssub.s32 1, %s8
  %s11 = scalar_select 0, %s10, %s8
  $region1: #{model_stacking_forward.1} parent=0
    #allocation2 [shape = 'u8[4096]{0}', space=vmem, size = 0x1000, scoped, tag = 'output window, operand 0, single buffered']
    // Predicated region
    $region2: #{model_stacking_forward.1} parent=1 // pred_check
      _
    $region3: #{model_stacking_forward.1} parent=1 // pred_check_branch
      %13 = sbr.rel (0) target = $region5
    $region4: #{model_stacking_forward.1} parent=1 // pred_region
      _
    $region5: #{model_stacking_forward.1} parent=1 // pred_fallthru
      _
    // Predicated region
    $region6: #{model_stacking_forward.1} parent=1 // pred_check
      _
    $region7: #{model_stacking_forward.1} parent=1 // pred_check_branch
      %15 = sbr.rel (0) target = $region9
    $region8: #{model_stacking_forward.1} parent=1 // pred_region
      _
    $region9: #{model_stacking_forward.1} parent=1 // pred_fallthru
      _
    // Predicated region
    $region10: #{model_stacking_forward.1} parent=1 // pred_check
      _
    $region11: #{model_stacking_forward.1} parent=1 // pred_check_branch
      %17 = sbr.rel (0) target = $region13
    $region12: #{model_stacking_forward.1} parent=1 // pred_region
      _
    $region13: #{model_stacking_forward.1} parent=1 // pred_fallthru
      _
    // Predicated region
    $region14: #{model_stacking_forward.1} parent=1 // pred_check
      _
    $region15: #{model_stacking_forward.1} parent=1 // pred_check_branch
      %19 = sbr.rel (0) target = $region17
    $region16: #{model_stacking_forward.1} parent=1 // pred_region
      _
    $region17: #{model_stacking_forward.1} parent=1 // pred_fallthru
      _
    // Predicated region
    $region18: #{model_stacking_forward.1} parent=1 // pred_check
      _
    $region19: #{model_stacking_forward.1} parent=1 // pred_check_branch
      %21 = sbr.rel (0) target = $region21
    $region20: #{model_stacking_forward.1} parent=1 // pred_region
      _
    $region21: #{model_stacking_forward.1} parent=1 // pred_fallthru
      _
    // Predicated region
    $region22: #{model_stacking_forward.1} parent=1 // pred_check
      _
    $region23: #{model_stacking_forward.1} parent=1 // pred_check_branch
      %23 = sbr.rel (0) target = $region25
    $region24: #{model_stacking_forward.1} parent=1 // pred_region
      _
    $region25: #{model_stacking_forward.1} parent=1 // pred_fallthru
      _
    // Predicated region
    $region26: #{model_stacking_forward.1} parent=1 // pred_check
      _
    $region27: #{model_stacking_forward.1} parent=1 // pred_check_branch
      %25 = sbr.rel (0) target = $region29
    $region28: #{model_stacking_forward.1} parent=1 // pred_region
      _
    $region29: #{model_stacking_forward.1} parent=1 // pred_fallthru
      _
    %v26 = vld [vmem:[%s0] sm:$0xff]
    %v27 = vld [vmem:[%s1] sm:$0xff]
    %v28 = vld [vmem:[%s1 + $0x8] sm:$0xff]
    %v29 = vld [vmem:[%s1 + $0x10] sm:$0xff]
    %v30 = vld [vmem:[%s1 + $0x18] sm:$0xff]
    %v31 = vld [vmem:[%s1 + $0x20] sm:$0xff]
    %v32 = vld [vmem:[%s1 + $0x28] sm:$0xff]
    %v33 = vld [vmem:[%s1 + $0x30] sm:$0xff]
    %v34 = vld [vmem:[%s1 + $0x38] sm:$0xff]
    %v35 = vld [vmem:[%s1 + $0x40] sm:$0xff]
    %v36 = vld [vmem:[%s1 + $0x48] sm:$0xff]
    %v37 = vld [vmem:[%s1 + $0x50] sm:$0xff]
    %v38 = vld [vmem:[%s1 + $0x58] sm:$0xff]
    %v39 = vld [vmem:[%s1 + $0x60] sm:$0xff]
    %v40 = vld [vmem:[%s1 + $0x68] sm:$0xff]
    %v41 = vld [vmem:[%s1 + $0x70] sm:$0xff]
    %v42 = vld [vmem:[%s1 + $0x78] sm:$0xff]
    %v43 = vld [vmem:[%s2] sm:$0x1]
    %v45 = vlaneseq
    %v46 = vshrl.u32 %v45, 7
    %v47 = vsub.s32 0, %v46
    %v48 = vrot.slane %v43, %v47
    %50 = vmatprep.subr.mxu0 0.0
    %51 = vmatpush1.msra.mxu0 %v27
    %52 = vmatprep.subr.mxu0 0.0
    %53 = vmatpush1.msra.mxu0 %v28
    %54 = vmatprep.subr.mxu0 0.0
    %55 = vmatpush1.msra.mxu0 %v29
    %56 = vmatprep.subr.mxu0 0.0
    %57 = vmatpush1.msra.mxu0 %v30
    %58 = vmatprep.subr.mxu0 0.0
    %59 = vmatpush1.msra.mxu0 %v31
    %60 = vmatprep.subr.mxu0 0.0
    %61 = vmatpush1.msra.mxu0 %v32
    %62 = vmatprep.subr.mxu0 0.0
    %63 = vmatpush1.msra.mxu0 %v33
    %64 = vmatprep.subr.mxu0 0.0
    %65 = vmatpush1.msra.mxu0 %v34
    %66 = vmatprep.subr.mxu0 0.0
    %67 = vmatpush1.msra.mxu0 %v35
    %68 = vmatprep.subr.mxu0 0.0
    %69 = vmatpush1.msra.mxu0 %v36
    %70 = vmatprep.subr.mxu0 0.0
    %71 = vmatpush1.msra.mxu0 %v37
    %72 = vmatprep.subr.mxu0 0.0
    %73 = vmatpush1.msra.mxu0 %v38
    %74 = vmatprep.subr.mxu0 0.0
    %75 = vmatpush1.msra.mxu0 %v39
    %76 = vmatprep.subr.mxu0 0.0
    %77 = vmatpush1.msra.mxu0 %v40
    %78 = vmatprep.subr.mxu0 0.0
    %79 = vmatpush1.msra.mxu0 %v41
    %80 = vmatprep.subr.mxu0 0.0
    %81 = vmatpush1.msra.mxu0 %v42
    %82 = vmatprep.subr.mxu0 0.0
    %83 = vmatpush1.msra.mxu0 0.0
    %84 = vmatprep.subr.mxu0 0.0
    %85 = vmatpush1.msra.mxu0 0.0
    %86 = vmatprep.subr.mxu0 0.0
    %87 = vmatpush1.msra.mxu0 0.0
    %88 = vmatprep.subr.mxu0 0.0
    %89 = vmatpush1.msra.mxu0 0.0
    %90 = vmatprep.subr.mxu0 0.0
    %91 = vmatpush1.msra.mxu0 0.0
    %92 = vmatprep.subr.mxu0 0.0
    %93 = vmatpush1.msra.mxu0 0.0
    %94 = vmatprep.subr.mxu0 0.0
    %95 = vmatpush1.msra.mxu0 0.0
    %96 = vmatprep.subr.mxu0 0.0
    %97 = vmatpush1.msra.mxu0 0.0
    %98 = vmatprep.subr.mxu0 0.0
    %99 = vmatpush1.msra.mxu0 0.0
    %100 = vmatprep.subr.mxu0 0.0
    %101 = vmatpush1.msra.mxu0 0.0
    %102 = vmatprep.subr.mxu0 0.0
    %103 = vmatpush1.msra.mxu0 0.0
    %104 = vmatprep.subr.mxu0 0.0
    %105 = vmatpush1.msra.mxu0 0.0
    %106 = vmatprep.subr.mxu0 0.0
    %107 = vmatpush1.msra.mxu0 0.0
    %108 = vmatprep.subr.mxu0 0.0
    %109 = vmatpush1.msra.mxu0 0.0
    %110 = vmatprep.subr.mxu0 0.0
    %111 = vmatpush1.msra.mxu0 0.0
    %112 = vmatprep.subr.mxu0 0.0
    %113 = vmatpush1.msra.mxu0 0.0
    %114 = vmatprep.mubr.f32.mxu0 0.0
    %115 = vmatmul.mubr.f32.gmra.mrb[0].mxu0 %v26
    %v116 = vpop.f32.mrb[0].mxu0
    %v117 = vadd.f32 %v48, %v116
    %v118 = vpop.f32.mrb[0].mxu0
    %119 = vdwg.mxu0
    %v120 = vmax.f32 %v117, 0.0
    %v121 = vld [vmem:[%s3] sm:$0xff]
    %v122 = vld [vmem:[%s3 + $0x8] sm:$0xff]
    %v123 = vld [vmem:[%s3 + $0x10] sm:$0xff]
    %v124 = vld [vmem:[%s3 + $0x18] sm:$0xff]
    %v125 = vld [vmem:[%s3 + $0x20] sm:$0xff]
    %v126 = vld [vmem:[%s3 + $0x28] sm:$0xff]
    %v127 = vld [vmem:[%s3 + $0x30] sm:$0xff]
    %v128 = vld [vmem:[%s3 + $0x38] sm:$0xff]
    %v129 = vld [vmem:[%s4] sm:$0x1]
    %v131 = vlaneseq
    %v132 = vshrl.u32 %v131, 7
    %v133 = vsub.s32 0, %v132
    %v134 = vrot.slane %v129, %v133
    %vm136 = vcmask 523264
    %v138 = vsel %vm136, %v120, 0
    %140 = vmatprep.subr.mxu0 0.0
    %141 = vmatpush1.msra.mxu0 %v121
    %142 = vmatprep.subr.mxu0 0.0
    %143 = vmatpush1.msra.mxu0 %v122
    %144 = vmatprep.subr.mxu0 0.0
    %145 = vmatpush1.msra.mxu0 %v123
    %146 = vmatprep.subr.mxu0 0.0
    %147 = vmatpush1.msra.mxu0 %v124
    %148 = vmatprep.subr.mxu0 0.0
    %149 = vmatpush1.msra.mxu0 %v125
    %150 = vmatprep.subr.mxu0 0.0
    %151 = vmatpush1.msra.mxu0 %v126
    %152 = vmatprep.subr.mxu0 0.0
    %153 = vmatpush1.msra.mxu0 %v127
    %154 = vmatprep.subr.mxu0 0.0
    %155 = vmatpush1.msra.mxu0 %v128
    %156 = vmatprep.subr.mxu0 0.0
    %157 = vmatpush1.msra.mxu0 0.0
    %158 = vmatprep.subr.mxu0 0.0
    %159 = vmatpush1.msra.mxu0 0.0
    %160 = vmatprep.subr.mxu0 0.0
    %161 = vmatpush1.msra.mxu0 0.0
    %162 = vmatprep.subr.mxu0 0.0
    %163 = vmatpush1.msra.mxu0 0.0
    %164 = vmatprep.subr.mxu0 0.0
    %165 = vmatpush1.msra.mxu0 0.0
    %166 = vmatprep.subr.mxu0 0.0
    %167 = vmatpush1.msra.mxu0 0.0
    %168 = vmatprep.subr.mxu0 0.0
    %169 = vmatpush1.msra.mxu0 0.0
    %170 = vmatprep.subr.mxu0 0.0
    %171 = vmatpush1.msra.mxu0 0.0
    %172 = vmatprep.subr.mxu0 0.0
    %173 = vmatpush1.msra.mxu0 0.0
    %174 = vmatprep.subr.mxu0 0.0
    %175 = vmatpush1.msra.mxu0 0.0
    %176 = vmatprep.subr.mxu0 0.0
    %177 = vmatpush1.msra.mxu0 0.0
    %178 = vmatprep.subr.mxu0 0.0
    %179 = vmatpush1.msra.mxu0 0.0
    %180 = vmatprep.subr.mxu0 0.0
    %181 = vmatpush1.msra.mxu0 0.0
    %182 = vmatprep.subr.mxu0 0.0
    %183 = vmatpush1.msra.mxu0 0.0
    %184 = vmatprep.subr.mxu0 0.0
    %185 = vmatpush1.msra.mxu0 0.0
    %186 = vmatprep.subr.mxu0 0.0
    %187 = vmatpush1.msra.mxu0 0.0
    %188 = vmatprep.subr.mxu0 0.0
    %189 = vmatpush1.msra.mxu0 0.0
    %190 = vmatprep.subr.mxu0 0.0
    %191 = vmatpush1.msra.mxu0 0.0
    %192 = vmatprep.subr.mxu0 0.0
    %193 = vmatpush1.msra.mxu0 0.0
    %194 = vmatprep.subr.mxu0 0.0
    %195 = vmatpush1.msra.mxu0 0.0
    %196 = vmatprep.subr.mxu0 0.0
    %197 = vmatpush1.msra.mxu0 0.0
    %198 = vmatprep.subr.mxu0 0.0
    %199 = vmatpush1.msra.mxu0 0.0
    %200 = vmatprep.subr.mxu0 0.0
    %201 = vmatpush1.msra.mxu0 0.0
    %202 = vmatprep.subr.mxu0 0.0
    %203 = vmatpush1.msra.mxu0 0.0
    %204 = vmatprep.mubr.f32.mxu0 0.0
    %205 = vmatmul.mubr.f32.gmra.mrb[0].mxu0 %v138
    %v206 = vpop.f32.mrb[0].mxu0
    %v207 = vadd.f32 %v134, %v206
    %v208 = vpop.f32.mrb[0].mxu0
    %209 = vdwg.mxu0
    %v210 = vmax.f32 %v207, 0.0
    %v211 = vld [vmem:[%s5] sm:$0xff]
    %v212 = vld [vmem:[%s5 + $0x8] sm:$0xff]
    %v213 = vld [vmem:[%s5 + $0x10] sm:$0xff]
    %v214 = vld [vmem:[%s5 + $0x18] sm:$0xff]
    %v215 = vld [vmem:[%s5 + $0x20] sm:$0xff]
    %v216 = vld [vmem:[%s5 + $0x28] sm:$0xff]
    %v217 = vld [vmem:[%s5 + $0x30] sm:$0xff]
    %v218 = vld [vmem:[%s5 + $0x38] sm:$0xff]
    %v219 = vld [vmem:[%s6] sm:$0x1]
    %v221 = vlaneseq
    %v222 = vshrl.u32 %v221, 7
    %v223 = vsub.s32 0, %v222
    %v224 = vrot.slane %v219, %v223
    %v227 = vsel %vm136, %v210, 0
    %229 = vmatprep.subr.mxu0 0.0
    %230 = vmatpush1.msra.mxu0 %v211
    %231 = vmatprep.subr.mxu0 0.0
    %232 = vmatpush1.msra.mxu0 %v212
    %233 = vmatprep.subr.mxu0 0.0
    %234 = vmatpush1.msra.mxu0 %v213
    %235 = vmatprep.subr.mxu0 0.0
    %236 = vmatpush1.msra.mxu0 %v214
    %237 = vmatprep.subr.mxu0 0.0
    %238 = vmatpush1.msra.mxu0 %v215
    %239 = vmatprep.subr.mxu0 0.0
    %240 = vmatpush1.msra.mxu0 %v216
    %241 = vmatprep.subr.mxu0 0.0
    %242 = vmatpush1.msra.mxu0 %v217
    %243 = vmatprep.subr.mxu0 0.0
    %244 = vmatpush1.msra.mxu0 %v218
    %245 = vmatprep.subr.mxu0 0.0
    %246 = vmatpush1.msra.mxu0 0.0
    %247 = vmatprep.subr.mxu0 0.0
    %248 = vmatpush1.msra.mxu0 0.0
    %249 = vmatprep.subr.mxu0 0.0
    %250 = vmatpush1.msra.mxu0 0.0
    %251 = vmatprep.subr.mxu0 0.0
    %252 = vmatpush1.msra.mxu0 0.0
    %253 = vmatprep.subr.mxu0 0.0
    %254 = vmatpush1.msra.mxu0 0.0
    %255 = vmatprep.subr.mxu0 0.0
    %256 = vmatpush1.msra.mxu0 0.0
    %257 = vmatprep.subr.mxu0 0.0
    %258 = vmatpush1.msra.mxu0 0.0
    %259 = vmatprep.subr.mxu0 0.0
    %260 = vmatpush1.msra.mxu0 0.0
    %261 = vmatprep.subr.mxu0 0.0
    %262 = vmatpush1.msra.mxu0 0.0
    %263 = vmatprep.subr.mxu0 0.0
    %264 = vmatpush1.msra.mxu0 0.0
    %265 = vmatprep.subr.mxu0 0.0
    %266 = vmatpush1.msra.mxu0 0.0
    %267 = vmatprep.subr.mxu0 0.0
    %268 = vmatpush1.msra.mxu0 0.0
    %269 = vmatprep.subr.mxu0 0.0
    %270 = vmatpush1.msra.mxu0 0.0
    %271 = vmatprep.subr.mxu0 0.0
    %272 = vmatpush1.msra.mxu0 0.0
    %273 = vmatprep.subr.mxu0 0.0
    %274 = vmatpush1.msra.mxu0 0.0
    %275 = vmatprep.subr.mxu0 0.0
    %276 = vmatpush1.msra.mxu0 0.0
    %277 = vmatprep.subr.mxu0 0.0
    %278 = vmatpush1.msra.mxu0 0.0
    %279 = vmatprep.subr.mxu0 0.0
    %280 = vmatpush1.msra.mxu0 0.0
    %281 = vmatprep.subr.mxu0 0.0
    %282 = vmatpush1.msra.mxu0 0.0
    %283 = vmatprep.subr.mxu0 0.0
    %284 = vmatpush1.msra.mxu0 0.0
    %285 = vmatprep.subr.mxu0 0.0
    %286 = vmatpush1.msra.mxu0 0.0
    %287 = vmatprep.subr.mxu0 0.0
    %288 = vmatpush1.msra.mxu0 0.0
    %289 = vmatprep.subr.mxu0 0.0
    %290 = vmatpush1.msra.mxu0 0.0
    %291 = vmatprep.subr.mxu0 0.0
    %292 = vmatpush1.msra.mxu0 0.0
    %293 = vmatprep.mubr.f32.mxu0 0.0
    %294 = vmatmul.mubr.f32.gmra.mrb[0].mxu0 %v227
    %v295 = vpop.f32.mrb[0].mxu0
    %v296 = vadd.f32 %v224, %v295
    %v297 = vpop.f32.mrb[0].mxu0
    %298 = vdwg.mxu0
    %vm299 = vcmask 130048
    %300 = vst.msk [vmem:[#allocation2] sm:$0xff] %vm299, %v296
    // Predicated region
    $region30: #{model_stacking_forward.1} parent=1 // pred_check
      _
    $region31: #{model_stacking_forward.1} parent=1 // pred_check_branch
      %302 = sbr.rel (0) target = $region33
    $region32: #{model_stacking_forward.1} parent=1 // pred_region
      // Predicated region
      $region34: #{model_stacking_forward.1} parent=32 // pred_check
        _
      $region35: #{model_stacking_forward.1} parent=32 // pred_check_branch
        %304 = sbr.rel (0) target = $region37
      $region36: #{model_stacking_forward.1} parent=32 // pred_region
        // Predicated region
        $region38: #{model_stacking_forward.1} parent=36 // pred_check
          _
        $region39: #{model_stacking_forward.1} parent=36 // pred_check_branch
          %306 = sbr.rel target = $region41
        $region40: #{model_stacking_forward.1} parent=36 // pred_region
          // Predicated region
          $region53: #{model_stacking_forward.1} parent=40 // pred_check
            _
          $region54: #{model_stacking_forward.1} parent=40 // pred_check_branch
            %321 = sbr.rel (0) target = $region56
          $region55: #{model_stacking_forward.1} parent=40 // pred_region
            loop: start=0, step=1, limit=1
            $region57: #{model_stacking_forward.1} parent=55 // loop_pre_header
              _
            $region58: #{model_stacking_forward.1} parent=55 // loop_header
              %s324 = sphi 0, %s328
              %p325 = scmp.ge.s32.totalorder %s324, 1
              %s329 = sphi [#allocation2], [#allocation2]
              %s330 = sphi %s7, %s7
            $region59: #{model_stacking_forward.1} parent=55 // loop_header_branch
              %327 = sbr.rel (%p325) target = $region63
            $region60: #{model_stacking_forward.1} parent=55 // loop_body
              %v331 = vld [vmem:[%s329] sm:$0x1]
              %332 = vst [vmem:[%s330] sm:$0x1] %v331
            $region61: #{model_stacking_forward.1} parent=55 // loop_footer
              %s328 = sadd.s32 1, %s324
            $region62: #{model_stacking_forward.1} parent=55 // loop_footer_branch
              %323 = sbr.rel target = $region58
            $region63: #{model_stacking_forward.1} parent=55 // loop_exit
              _
          $region56: #{model_stacking_forward.1} parent=40 // pred_fallthru
            _
        $region41: #{model_stacking_forward.1} parent=36 // pred_fallthru
          _
        // Predicated region
        $region42: #{model_stacking_forward.1} parent=36 // pred_check
          _
        $region43: #{model_stacking_forward.1} parent=36 // pred_check_branch
          %308 = sbr.rel (0) target = $region45
        $region44: #{model_stacking_forward.1} parent=36 // pred_region
          loop: start=0, step=1, limit=1
          $region46: #{model_stacking_forward.1} parent=44 // loop_pre_header
            _
          $region47: #{model_stacking_forward.1} parent=44 // loop_header
            %s311 = sphi 0, %s315
            %p312 = scmp.ge.s32.totalorder %s311, 1
            %s316 = sphi [#allocation2], [#allocation2]
            %s317 = sphi %s7, %s7
          $region48: #{model_stacking_forward.1} parent=44 // loop_header_branch
            %314 = sbr.rel (%p312) target = $region52
          $region49: #{model_stacking_forward.1} parent=44 // loop_body
            %v318 = vld [vmem:[%s316] sm:$0x1]
            %319 = vst [vmem:[%s317] sm:$0x1] %v318
          $region50: #{model_stacking_forward.1} parent=44 // loop_footer
            %s315 = sadd.s32 1, %s311
          $region51: #{model_stacking_forward.1} parent=44 // loop_footer_branch
            %310 = sbr.rel target = $region47
          $region52: #{model_stacking_forward.1} parent=44 // loop_exit
            _
        $region45: #{model_stacking_forward.1} parent=36 // pred_fallthru
          _
      $region37: #{model_stacking_forward.1} parent=32 // pred_fallthru
        _
      %333 = vnop
    $region33: #{model_stacking_forward.1} parent=1 // pred_fallthru
      _
    // Predicated region
    $region64: #{model_stacking_forward.1} parent=1 // pred_check
      _
    $region65: #{model_stacking_forward.1} parent=1 // pred_check_branch
      %335 = sbr.rel (0) target = $region67
    $region66: #{model_stacking_forward.1} parent=1 // pred_region
      _
    $region67: #{model_stacking_forward.1} parent=1 // pred_fallthru
      _

</llo_original>
